<compile_context>
chip_gen: v5e
topology: v5e:2x2
jax: 0.10.0
libtpu: 0.0.40
codegen_flags: <defaults>
</compile_context>

<pallas_src>
import functools

import jax
import jax.numpy as jnp
from jax.experimental import pallas as pl
from jax.experimental.pallas import tpu as pltpu

USER_EMBED_DIM = 100   # D  (torch module)
PADDED_DIM = 128       # D padded to the 128-lane vreg width


def _ncf_kernel(e_ref, jp_ref, jn_ref,
                w1a_ref, w1b_ref, b1_ref,
                w2_ref, b2_ref, w3_ref, b3_ref,
                f1a_ref, f1b_ref, fb1_ref,
                f2_ref, fb2_ref,
                out_ref):
    """sigmoid(predict(e, j_pos) - predict(e, j_neg)) for one batch tile."""
    e = e_ref[...]                 # (TB, 128) compute dtype
    cdt = e.dtype
    tb = e.shape[0]

    # Fuse the positive/negative passes: stack along the batch (sublane) axis
    # so the shared layers run once with M = 2*TB.
    j = jnp.concatenate([jp_ref[...], jn_ref[...]], axis=0)       # (2TB, 128)
    ee = jnp.concatenate([e, e], axis=0)                          # (2TB, 128)

    # GMF branch: elementwise product of the embeddings (VPU).
    gmf = ee * j                                                  # (2TB, 128)

    # MLP layer 1: Linear(2D, D) over concat([e, j]) split into two K=128
    # matmuls.  The e-side matmul is shared between the pos and neg halves.
    ex = jnp.dot(e, w1a_ref[...], preferred_element_type=jnp.float32)   # (TB, 128)
    jx = jnp.dot(j, w1b_ref[...], preferred_element_type=jnp.float32)   # (2TB, 128)
    h = jnp.concatenate([ex, ex], axis=0) + jx + b1_ref[...]
    h = jnp.maximum(h, 0.0).astype(cdt)
    # MLP layers 2, 3.
    h = jnp.dot(h, w2_ref[...], preferred_element_type=jnp.float32) + b2_ref[...]
    h = jnp.maximum(h, 0.0).astype(cdt)
    mlp = jnp.dot(h, w3_ref[...], preferred_element_type=jnp.float32) + b3_ref[...]

    # final_mlp layer 1: Linear(2D, D) over concat([gmf, mlp]) split into two
    # K=128 matmuls (no lane-axis concat materialization).
    z = (jnp.dot(gmf, f1a_ref[...], preferred_element_type=jnp.float32)
         + jnp.dot(mlp.astype(cdt), f1b_ref[...], preferred_element_type=jnp.float32)
         + fb1_ref[...])
    z = jax.nn.sigmoid(z)                                         # (2TB, 128) f32
    # Padded lanes of z hold sigmoid(0)=0.5, but their f2 weights are zero.

    # final_mlp layer 2 (N=1): VPU multiply + XLU lane reduction instead of an
    # MXU matmul with a single output column.
    s = jnp.sum(z * f2_ref[...], axis=-1, keepdims=True) + fb2_ref[...]   # (2TB, 1)
    s = jax.nn.sigmoid(s)

    out_ref[...] = jax.nn.sigmoid(s[:tb] - s[tb:])                # (TB, 1) f32


@functools.partial(jax.jit, static_argnames=("e2j_flag", "compute_dtype", "block_rows"))
def ncf_forward_pallas(params, ids, ids_pair, e2j_flag=True,
                       compute_dtype=jnp.float32, block_rows=1024):
    """JAX wrapper reproducing NCF.forward semantics.

    ids:      (B,)  int32 indices
    ids_pair: (B,2) int32 indices [positive, negative]
    returns:  (B,)  float32
    """
    D, DP = USER_EMBED_DIM, PADDED_DIM
    cdt = compute_dtype

    # ----- embedding gather (plain JAX, same jit) ---------------------------
    if e2j_flag:
        e = params["expect_emb"][ids]
        jp = params["job_emb"][ids_pair[:, 0]]
        jn = params["job_emb"][ids_pair[:, 1]]
        # torch concat order is [expect, job] -> e multiplies w1[:D]
        w1_e, w1_j = params["w1"][:D], params["w1"][D:]
    else:
        e = params["job_emb"][ids]
        jp = params["expect_emb"][ids_pair[:, 0]]
        jn = params["expect_emb"][ids_pair[:, 1]]
        # torch concat order is [expect, job] -> e (job) multiplies w1[D:]
        w1_e, w1_j = params["w1"][D:], params["w1"][:D]
    f1_gmf, f1_mlp = params["f1"][:D], params["f1"][D:]   # [gmf, mlp] order fixed

    B = e.shape[0]
    b_pad8 = ((B + 7) // 8) * 8
    tb = max(8, (min(block_rows, b_pad8) // 8) * 8)        # f32 sublane multiple
    n_tiles = pl.cdiv(B, tb)
    b_pad = n_tiles * tb

    def pad_act(x):   # (B, D) -> (b_pad, DP), compute dtype
        return jnp.pad(x, ((0, b_pad - B), (0, DP - D))).astype(cdt)

    e, jp, jn = pad_act(e), pad_act(jp), pad_act(jn)

    # ----- weights: pad to lane-aligned (128,128) tiles (resident in VMEM) --
    def pad_sq(w):   # (D, D) -> (DP, DP)
        return jnp.zeros((DP, DP), cdt).at[:D, :D].set(w.astype(cdt))

    w1a, w1b = pad_sq(w1_e), pad_sq(w1_j)
    w2, w3 = pad_sq(params["w2"]), pad_sq(params["w3"])
    f1a, f1b = pad_sq(f1_gmf), pad_sq(f1_mlp)

    def pad_bias(b):   # (D,) -> (1, DP) f32
        return jnp.zeros((1, DP), jnp.float32).at[0, :D].set(b.astype(jnp.float32))

    b1, b2, b3, fb1 = (pad_bias(params[k]) for k in ("b1", "b2", "b3", "fb1"))
    f2_row = jnp.zeros((1, DP), jnp.float32).at[0, :D].set(
        params["f2"][:, 0].astype(jnp.float32))
    fb2 = params["fb2"].astype(jnp.float32).reshape(1, 1)

    act_spec = pl.BlockSpec((tb, DP), lambda i: (i, 0))

    def res(shape):   # resident across the whole grid (constant block index)
        return pl.BlockSpec(shape, lambda i: (0, 0))

    out = pl.pallas_call(
        _ncf_kernel,
        out_shape=jax.ShapeDtypeStruct((b_pad, 1), jnp.float32),
        grid=(n_tiles,),
        in_specs=[act_spec, act_spec, act_spec,
                  res((DP, DP)), res((DP, DP)), res((1, DP)),
                  res((DP, DP)), res((1, DP)),
                  res((DP, DP)), res((1, DP)),
                  res((DP, DP)), res((DP, DP)), res((1, DP)),
                  res((1, DP)), res((1, 1))],
        out_specs=pl.BlockSpec((tb, 1), lambda i: (i, 0)),
        compiler_params=pltpu.CompilerParams(
            dimension_semantics=("parallel",)),
    )(e, jp, jn, w1a, w1b, b1, w2, b2, w3, b3, f1a, f1b, fb1, f2_row, fb2)
    return out[:B, 0]   # squeeze(-1)


def init_params(key, n_expects, n_jobs):
    """Deterministic synthetic parameter init (shapes match the torch module)."""
    D = USER_EMBED_DIM
    ks = jax.random.split(key, 12)

    def linear(kw, kb, fan_in, fan_out):
        bound = 1.0 / jnp.sqrt(fan_in)
        w = jax.random.uniform(kw, (fan_in, fan_out), jnp.float32, -bound, bound)
        b = jax.random.uniform(kb, (fan_out,), jnp.float32, -bound, bound)
        return w, b

    expect_emb = jax.random.normal(ks[0], (n_expects, D), jnp.float32)
    job_emb = jax.random.normal(ks[1], (n_jobs, D), jnp.float32)
    w1, b1 = linear(ks[2], ks[3], 2 * D, D)
    w2, b2 = linear(ks[4], ks[5], D, D)
    w3, b3 = linear(ks[6], ks[7], D, D)
    f1, fb1 = linear(ks[8], ks[9], 2 * D, D)
    f2, fb2 = linear(ks[10], ks[11], D, 1)
    return dict(expect_emb=expect_emb, job_emb=job_emb,
                w1=w1, b1=b1, w2=w2, b2=b2, w3=w3, b3=b3,
                f1=f1, fb1=fb1, f2=f2, fb2=fb2)


def ncf_forward_ref(params, ids, ids_pair, e2j_flag=True):
    """Pure-JAX reference mirroring the torch code."""
    def predict(ids1, ids2, flag):
        if flag:
            e = params["expect_emb"][ids1]
            j = params["job_emb"][ids2]
        else:
            j = params["job_emb"][ids1]
            e = params["expect_emb"][ids2]
        gmf = e * j
        x = jnp.concatenate([e, j], axis=-1)
        h = jnp.maximum(x @ params["w1"] + params["b1"], 0.0)
        h = jnp.maximum(h @ params["w2"] + params["b2"], 0.0)
        mlp = h @ params["w3"] + params["b3"]
        z = jax.nn.sigmoid(jnp.concatenate([gmf, mlp], -1) @ params["f1"] + params["fb1"])
        return jax.nn.sigmoid(z @ params["f2"] + params["fb2"])[:, 0]

    sp = predict(ids, ids_pair[:, 0], e2j_flag)
    sn = predict(ids, ids_pair[:, 1], e2j_flag)
    return jax.nn.sigmoid(sp - sn)


if __name__ == "__main__":
    key = jax.random.PRNGKey(0)
    n_expects, n_jobs, batch = 50, 60, 13   # batch not a multiple of 8 on purpose

    kp, ki1, ki2 = jax.random.split(key, 3)
    params = init_params(kp, n_expects, n_jobs)
    ids = jax.random.randint(ki1, (batch,), 0, n_expects, dtype=jnp.int32)
    ids_pair = jax.random.randint(ki2, (batch, 2), 0, n_jobs, dtype=jnp.int32)

    # f32, e2j_flag=True, multi-tile grid (block_rows=8 -> 2 tiles + remainder)
    out = ncf_forward_pallas(params, ids, ids_pair, e2j_flag=True,
                             compute_dtype=jnp.float32, block_rows=8)
    out = jax.block_until_ready(out)
    ref = ncf_forward_ref(params, ids, ids_pair, e2j_flag=True)
    assert out.shape == (batch,)
    assert jnp.allclose(out, ref, atol=1e-4, rtol=1e-4), (out, ref)

    # f32, e2j_flag=False path (weight-half swap)
    out_f = ncf_forward_pallas(params, ids, ids_pair, e2j_flag=False,
                               compute_dtype=jnp.float32, block_rows=8)
    out_f = jax.block_until_ready(out_f)
    ref_f = ncf_forward_ref(params, ids, ids_pair, e2j_flag=False)
    assert jnp.allclose(out_f, ref_f, atol=1e-4, rtol=1e-4), (out_f, ref_f)

    # single-tile path with the default (large) block size
    out_big = ncf_forward_pallas(params, ids, ids_pair, e2j_flag=True,
                                 compute_dtype=jnp.float32)
    out_big = jax.block_until_ready(out_big)
    assert jnp.allclose(out_big, ref, atol=1e-4, rtol=1e-4), (out_big, ref)

    # bf16 operands (f32 accumulation) — looser tolerance
    out_bf = ncf_forward_pallas(params, ids, ids_pair, e2j_flag=True,
                                compute_dtype=jnp.bfloat16, block_rows=8)
    out_bf = jax.block_until_ready(out_bf)
    assert jnp.allclose(out_bf, ref, atol=5e-2), (out_bf, ref)

    print("KERNEL_OK")
</pallas_src>

<mosaic_0001>
module attributes {stable_mosaic.version = 11 : i64} {
  func.func @_ncf_kernel(%arg0: i32, %arg1: memref<8x128xf32, #tpu.memory_space<vmem>>, %arg2: memref<8x128xf32, #tpu.memory_space<vmem>>, %arg3: memref<8x128xf32, #tpu.memory_space<vmem>>, %arg4: memref<128x128xf32, #tpu.memory_space<vmem>>, %arg5: memref<128x128xf32, #tpu.memory_space<vmem>>, %arg6: memref<1x128xf32, #tpu.memory_space<vmem>>, %arg7: memref<128x128xf32, #tpu.memory_space<vmem>>, %arg8: memref<1x128xf32, #tpu.memory_space<vmem>>, %arg9: memref<128x128xf32, #tpu.memory_space<vmem>>, %arg10: memref<1x128xf32, #tpu.memory_space<vmem>>, %arg11: memref<128x128xf32, #tpu.memory_space<vmem>>, %arg12: memref<128x128xf32, #tpu.memory_space<vmem>>, %arg13: memref<1x128xf32, #tpu.memory_space<vmem>>, %arg14: memref<1x128xf32, #tpu.memory_space<vmem>>, %arg15: memref<1x1xf32, #tpu.memory_space<vmem>>, %arg16: memref<8x1xf32, #tpu.memory_space<vmem>>) attributes {dimension_semantics = [#tpu.dimension_semantics<parallel>], iteration_bounds = array<i64: 2>, scalar_prefetch = 0 : i64, scratch_operands = 0 : i64, tpu.core_type = #tpu.core_type<tc>, window_params = [{transform_indices = @transform_0, window_bounds = array<i64: 8, 128>}, {transform_indices = @transform_1, window_bounds = array<i64: 8, 128>}, {transform_indices = @transform_2, window_bounds = array<i64: 8, 128>}, {pipeline_mode = #tpu.pipeline_mode<synchronous>, transform_indices = @transform_3, window_bounds = array<i64: 128, 128>}, {pipeline_mode = #tpu.pipeline_mode<synchronous>, transform_indices = @transform_4, window_bounds = array<i64: 128, 128>}, {pipeline_mode = #tpu.pipeline_mode<synchronous>, transform_indices = @transform_5, window_bounds = array<i64: 1, 128>}, {pipeline_mode = #tpu.pipeline_mode<synchronous>, transform_indices = @transform_6, window_bounds = array<i64: 128, 128>}, {pipeline_mode = #tpu.pipeline_mode<synchronous>, transform_indices = @transform_7, window_bounds = array<i64: 1, 128>}, {pipeline_mode = #tpu.pipeline_mode<synchronous>, transform_indices = @transform_8, window_bounds = array<i64: 128, 128>}, {pipeline_mode = #tpu.pipeline_mode<synchronous>, transform_indices = @transform_9, window_bounds = array<i64: 1, 128>}, {pipeline_mode = #tpu.pipeline_mode<synchronous>, transform_indices = @transform_10, window_bounds = array<i64: 128, 128>}, {pipeline_mode = #tpu.pipeline_mode<synchronous>, transform_indices = @transform_11, window_bounds = array<i64: 128, 128>}, {pipeline_mode = #tpu.pipeline_mode<synchronous>, transform_indices = @transform_12, window_bounds = array<i64: 1, 128>}, {pipeline_mode = #tpu.pipeline_mode<synchronous>, transform_indices = @transform_13, window_bounds = array<i64: 1, 128>}, {pipeline_mode = #tpu.pipeline_mode<synchronous>, transform_indices = @transform_14, window_bounds = array<i64: 1, 1>}, {transform_indices = @transform_15, window_bounds = array<i64: 8, 1>}]} {
    %c0 = arith.constant 0 : index
    %c0_0 = arith.constant 0 : index
    %0 = vector.load %arg1[%c0, %c0_0] : memref<8x128xf32, #tpu.memory_space<vmem>>, vector<8x128xf32>
    %c0_1 = arith.constant 0 : index
    %c0_2 = arith.constant 0 : index
    %1 = vector.load %arg2[%c0_1, %c0_2] : memref<8x128xf32, #tpu.memory_space<vmem>>, vector<8x128xf32>
    %c0_3 = arith.constant 0 : index
    %c0_4 = arith.constant 0 : index
    %2 = vector.load %arg3[%c0_3, %c0_4] : memref<8x128xf32, #tpu.memory_space<vmem>>, vector<8x128xf32>
    %3 = tpu.concatenate %1, %2 in 0 : vector<8x128xf32>, vector<8x128xf32> -> vector<16x128xf32>
    %4 = tpu.concatenate %0, %0 in 0 : vector<8x128xf32>, vector<8x128xf32> -> vector<16x128xf32>
    %5 = arith.mulf %4, %3 : vector<16x128xf32>
    %c0_5 = arith.constant 0 : index
    %c0_6 = arith.constant 0 : index
    %6 = vector.load %arg4[%c0_5, %c0_6] : memref<128x128xf32, #tpu.memory_space<vmem>>, vector<128x128xf32>
    %cst = arith.constant dense<0.000000e+00> : vector<8x128xf32>
    %7 = tpu.matmul %0, %6, %cst {dimension_numbers = #tpu.dot_dimension_numbers<[1], [0], [0], [1], [0, 0, 1, 1], [], []>} : vector<8x128xf32>, vector<128x128xf32>, vector<8x128xf32> -> vector<8x128xf32>
    %c0_7 = arith.constant 0 : index
    %c0_8 = arith.constant 0 : index
    %8 = vector.load %arg5[%c0_7, %c0_8] : memref<128x128xf32, #tpu.memory_space<vmem>>, vector<128x128xf32>
    %cst_9 = arith.constant dense<0.000000e+00> : vector<16x128xf32>
    %9 = tpu.matmul %3, %8, %cst_9 {dimension_numbers = #tpu.dot_dimension_numbers<[1], [0], [0], [1], [0, 0, 1, 1], [], []>} : vector<16x128xf32>, vector<128x128xf32>, vector<16x128xf32> -> vector<16x128xf32>
    %10 = tpu.concatenate %7, %7 in 0 : vector<8x128xf32>, vector<8x128xf32> -> vector<16x128xf32>
    %11 = arith.addf %10, %9 : vector<16x128xf32>
    %c0_10 = arith.constant 0 : index
    %c0_11 = arith.constant 0 : index
    %12 = vector.load %arg6[%c0_10, %c0_11] : memref<1x128xf32, #tpu.memory_space<vmem>>, vector<1x128xf32>
    %13 = vector.broadcast %12 : vector<1x128xf32> to vector<16x128xf32>
    %14 = arith.addf %11, %13 : vector<16x128xf32>
    %cst_12 = arith.constant 0.000000e+00 : f32
    %15 = vector.broadcast %cst_12 : f32 to vector<16x128xf32>
    %16 = arith.maximumf %14, %15 : vector<16x128xf32>
    %c0_13 = arith.constant 0 : index
    %c0_14 = arith.constant 0 : index
    %17 = vector.load %arg7[%c0_13, %c0_14] : memref<128x128xf32, #tpu.memory_space<vmem>>, vector<128x128xf32>
    %cst_15 = arith.constant dense<0.000000e+00> : vector<16x128xf32>
    %18 = tpu.matmul %16, %17, %cst_15 {dimension_numbers = #tpu.dot_dimension_numbers<[1], [0], [0], [1], [0, 0, 1, 1], [], []>} : vector<16x128xf32>, vector<128x128xf32>, vector<16x128xf32> -> vector<16x128xf32>
    %c0_16 = arith.constant 0 : index
    %c0_17 = arith.constant 0 : index
    %19 = vector.load %arg8[%c0_16, %c0_17] : memref<1x128xf32, #tpu.memory_space<vmem>>, vector<1x128xf32>
    %20 = vector.broadcast %19 : vector<1x128xf32> to vector<16x128xf32>
    %21 = arith.addf %18, %20 : vector<16x128xf32>
    %cst_18 = arith.constant 0.000000e+00 : f32
    %22 = vector.broadcast %cst_18 : f32 to vector<16x128xf32>
    %23 = arith.maximumf %21, %22 : vector<16x128xf32>
    %c0_19 = arith.constant 0 : index
    %c0_20 = arith.constant 0 : index
    %24 = vector.load %arg9[%c0_19, %c0_20] : memref<128x128xf32, #tpu.memory_space<vmem>>, vector<128x128xf32>
    %cst_21 = arith.constant dense<0.000000e+00> : vector<16x128xf32>
    %25 = tpu.matmul %23, %24, %cst_21 {dimension_numbers = #tpu.dot_dimension_numbers<[1], [0], [0], [1], [0, 0, 1, 1], [], []>} : vector<16x128xf32>, vector<128x128xf32>, vector<16x128xf32> -> vector<16x128xf32>
    %c0_22 = arith.constant 0 : index
    %c0_23 = arith.constant 0 : index
    %26 = vector.load %arg10[%c0_22, %c0_23] : memref<1x128xf32, #tpu.memory_space<vmem>>, vector<1x128xf32>
    %27 = vector.broadcast %26 : vector<1x128xf32> to vector<16x128xf32>
    %28 = arith.addf %25, %27 : vector<16x128xf32>
    %c0_24 = arith.constant 0 : index
    %c0_25 = arith.constant 0 : index
    %29 = vector.load %arg11[%c0_24, %c0_25] : memref<128x128xf32, #tpu.memory_space<vmem>>, vector<128x128xf32>
    %cst_26 = arith.constant dense<0.000000e+00> : vector<16x128xf32>
    %30 = tpu.matmul %5, %29, %cst_26 {dimension_numbers = #tpu.dot_dimension_numbers<[1], [0], [0], [1], [0, 0, 1, 1], [], []>} : vector<16x128xf32>, vector<128x128xf32>, vector<16x128xf32> -> vector<16x128xf32>
    %c0_27 = arith.constant 0 : index
    %c0_28 = arith.constant 0 : index
    %31 = vector.load %arg12[%c0_27, %c0_28] : memref<128x128xf32, #tpu.memory_space<vmem>>, vector<128x128xf32>
    %cst_29 = arith.constant dense<0.000000e+00> : vector<16x128xf32>
    %32 = tpu.matmul %28, %31, %cst_29 {dimension_numbers = #tpu.dot_dimension_numbers<[1], [0], [0], [1], [0, 0, 1, 1], [], []>} : vector<16x128xf32>, vector<128x128xf32>, vector<16x128xf32> -> vector<16x128xf32>
    %33 = arith.addf %30, %32 : vector<16x128xf32>
    %c0_30 = arith.constant 0 : index
    %c0_31 = arith.constant 0 : index
    %34 = vector.load %arg13[%c0_30, %c0_31] : memref<1x128xf32, #tpu.memory_space<vmem>>, vector<1x128xf32>
    %35 = vector.broadcast %34 : vector<1x128xf32> to vector<16x128xf32>
    %36 = arith.addf %33, %35 : vector<16x128xf32>
    %37 = arith.negf %36 : vector<16x128xf32>
    %38 = math.exp %37 : vector<16x128xf32>
    %cst_32 = arith.constant 1.000000e+00 : f32
    %39 = vector.broadcast %cst_32 : f32 to vector<16x128xf32>
    %40 = arith.addf %39, %38 : vector<16x128xf32>
    %41 = arith.divf %39, %40 : vector<16x128xf32>
    %c0_33 = arith.constant 0 : index
    %c0_34 = arith.constant 0 : index
    %42 = vector.load %arg14[%c0_33, %c0_34] : memref<1x128xf32, #tpu.memory_space<vmem>>, vector<1x128xf32>
    %43 = vector.broadcast %42 : vector<1x128xf32> to vector<16x128xf32>
    %44 = arith.mulf %41, %43 : vector<16x128xf32>
    %cst_35 = arith.constant dense<0.000000e+00> : vector<16xf32>
    %45 = vector.multi_reduction <add>, %44, %cst_35 [1] : vector<16x128xf32> to vector<16xf32>
    %46 = vector.shape_cast %45 : vector<16xf32> to vector<16x1xf32>
    %c0_36 = arith.constant 0 : index
    %c0_37 = arith.constant 0 : index
    %47 = vector.load %arg15[%c0_36, %c0_37] : memref<1x1xf32, #tpu.memory_space<vmem>>, vector<1x1xf32>
    %48 = vector.broadcast %47 : vector<1x1xf32> to vector<16x1xf32>
    %49 = arith.addf %46, %48 : vector<16x1xf32>
    %50 = arith.negf %49 : vector<16x1xf32>
    %51 = math.exp %50 : vector<16x1xf32>
    %cst_38 = arith.constant 1.000000e+00 : f32
    %52 = vector.broadcast %cst_38 : f32 to vector<16x1xf32>
    %53 = arith.addf %52, %51 : vector<16x1xf32>
    %54 = arith.divf %52, %53 : vector<16x1xf32>
    %55 = vector.extract_strided_slice %54 {offsets = [0, 0], sizes = [8, 1], strides = [1, 1]} : vector<16x1xf32> to vector<8x1xf32>
    %56 = vector.extract_strided_slice %54 {offsets = [8, 0], sizes = [8, 1], strides = [1, 1]} : vector<16x1xf32> to vector<8x1xf32>
    %57 = arith.subf %55, %56 : vector<8x1xf32>
    %58 = arith.negf %57 : vector<8x1xf32>
    %59 = math.exp %58 : vector<8x1xf32>
    %cst_39 = arith.constant 1.000000e+00 : f32
    %60 = vector.broadcast %cst_39 : f32 to vector<8x1xf32>
    %61 = arith.addf %60, %59 : vector<8x1xf32>
    %62 = arith.divf %60, %61 : vector<8x1xf32>
    %c0_40 = arith.constant 0 : index
    %c0_41 = arith.constant 0 : index
    %63 = vector.load %arg16[%c0_40, %c0_41] : memref<8x1xf32, #tpu.memory_space<vmem>>, vector<8x1xf32>
    tpu.vector_store %arg16[%c0_40, %c0_41], %62 {strides = array<i32>} : memref<8x1xf32, #tpu.memory_space<vmem>>, vector<8x1xf32>,
    return
  }
  func.func @transform_0(%arg0: i32) -> (i32, i32) {
    %c0_i32 = arith.constant 0 : i32
    %c0_i32_0 = arith.constant 0 : i32
    return %arg0, %c0_i32 : i32, i32
  }
  func.func @transform_1(%arg0: i32) -> (i32, i32) {
    %c0_i32 = arith.constant 0 : i32
    %c0_i32_0 = arith.constant 0 : i32
    return %arg0, %c0_i32 : i32, i32
  }
  func.func @transform_2(%arg0: i32) -> (i32, i32) {
    %c0_i32 = arith.constant 0 : i32
    %c0_i32_0 = arith.constant 0 : i32
    return %arg0, %c0_i32 : i32, i32
  }
  func.func @transform_3(%arg0: i32) -> (i32, i32) {
    %c0_i32 = arith.constant 0 : i32
    %c0_i32_0 = arith.constant 0 : i32
    %c0_i32_1 = arith.constant 0 : i32
    return %c0_i32, %c0_i32_0 : i32, i32
  }
  func.func @transform_4(%arg0: i32) -> (i32, i32) {
    %c0_i32 = arith.constant 0 : i32
    %c0_i32_0 = arith.constant 0 : i32
    %c0_i32_1 = arith.constant 0 : i32
    return %c0_i32, %c0_i32_0 : i32, i32
  }
  func.func @transform_5(%arg0: i32) -> (i32, i32) {
    %c0_i32 = arith.constant 0 : i32
    %c0_i32_0 = arith.constant 0 : i32
    %c0_i32_1 = arith.constant 0 : i32
    return %c0_i32, %c0_i32_0 : i32, i32
  }
  func.func @transform_6(%arg0: i32) -> (i32, i32) {
    %c0_i32 = arith.constant 0 : i32
    %c0_i32_0 = arith.constant 0 : i32
    %c0_i32_1 = arith.constant 0 : i32
    return %c0_i32, %c0_i32_0 : i32, i32
  }
  func.func @transform_7(%arg0: i32) -> (i32, i32) {
    %c0_i32 = arith.constant 0 : i32
    %c0_i32_0 = arith.constant 0 : i32
    %c0_i32_1 = arith.constant 0 : i32
    return %c0_i32, %c0_i32_0 : i32, i32
  }
  func.func @transform_8(%arg0: i32) -> (i32, i32) {
    %c0_i32 = arith.constant 0 : i32
    %c0_i32_0 = arith.constant 0 : i32
    %c0_i32_1 = arith.constant 0 : i32
    return %c0_i32, %c0_i32_0 : i32, i32
  }
  func.func @transform_9(%arg0: i32) -> (i32, i32) {
    %c0_i32 = arith.constant 0 : i32
    %c0_i32_0 = arith.constant 0 : i32
    %c0_i32_1 = arith.constant 0 : i32
    return %c0_i32, %c0_i32_0 : i32, i32
  }
  func.func @transform_10(%arg0: i32) -> (i32, i32) {
    %c0_i32 = arith.constant 0 : i32
    %c0_i32_0 = arith.constant 0 : i32
    %c0_i32_1 = arith.constant 0 : i32
    return %c0_i32, %c0_i32_0 : i32, i32
  }
  func.func @transform_11(%arg0: i32) -> (i32, i32) {
    %c0_i32 = arith.constant 0 : i32
    %c0_i32_0 = arith.constant 0 : i32
    %c0_i32_1 = arith.constant 0 : i32
    return %c0_i32, %c0_i32_0 : i32, i32
  }
  func.func @transform_12(%arg0: i32) -> (i32, i32) {
    %c0_i32 = arith.constant 0 : i32
    %c0_i32_0 = arith.constant 0 : i32
    %c0_i32_1 = arith.constant 0 : i32
    return %c0_i32, %c0_i32_0 : i32, i32
  }
  func.func @transform_13(%arg0: i32) -> (i32, i32) {
    %c0_i32 = arith.constant 0 : i32
    %c0_i32_0 = arith.constant 0 : i32
    %c0_i32_1 = arith.constant 0 : i32
    return %c0_i32, %c0_i32_0 : i32, i32
  }
  func.func @transform_14(%arg0: i32) -> (i32, i32) {
    %c0_i32 = arith.constant 0 : i32
    %c0_i32_0 = arith.constant 0 : i32
    %c0_i32_1 = arith.constant 0 : i32
    return %c0_i32, %c0_i32_0 : i32, i32
  }
  func.func @transform_15(%arg0: i32) -> (i32, i32) {
    %c0_i32 = arith.constant 0 : i32
    %c0_i32_0 = arith.constant 0 : i32
    return %arg0, %c0_i32 : i32, i32
  }
}

</mosaic_0001>

<llo_original>
// kernel: ncf_forward_pallas.1
$region0: #{ncf_forward_pallas.1}
  #allocation0 [shape = 'u32[]', space=smem, size = 0x4, offset = 0x4, fixed_abs, tag = 'smem constant byte address 0x4 - core index']
  #allocation1 [shape = 'u32[72,128]{1,0:T(1,128)}', space=vmem, size = 0x9000, scoped, tag = 'internal scratch']
  #allocation2 [shape = 'f32[1,1]{1,0:T(1,128)S(1)}', space=vmem, size = 0x200, scoped, tag = 'scoped memory for ncf_forward_pallas.1']
  %s0 = inlined_call_operand.vmem [shape: f32[16,128], index: 0, kind: input, shape index: {}]
  %s1 = inlined_call_operand.vmem [shape: f32[16,128], index: 1, kind: input, shape index: {}]
  %s2 = inlined_call_operand.vmem [shape: f32[16,128], index: 2, kind: input, shape index: {}]
  %s3 = inlined_call_operand.vmem [shape: f32[128,128], index: 3, kind: input, shape index: {}]
  %s4 = inlined_call_operand.vmem [shape: f32[128,128], index: 4, kind: input, shape index: {}]
  %s5 = inlined_call_operand.vmem [shape: f32[1,128], index: 5, kind: input, shape index: {}]
  %s6 = inlined_call_operand.vmem [shape: f32[128,128], index: 6, kind: input, shape index: {}]
  %s7 = inlined_call_operand.vmem [shape: f32[1,128], index: 7, kind: input, shape index: {}]
  %s8 = inlined_call_operand.vmem [shape: f32[128,128], index: 8, kind: input, shape index: {}]
  %s9 = inlined_call_operand.vmem [shape: f32[1,128], index: 9, kind: input, shape index: {}]
  %s10 = inlined_call_operand.vmem [shape: f32[128,128], index: 10, kind: input, shape index: {}]
  %s11 = inlined_call_operand.vmem [shape: f32[128,128], index: 11, kind: input, shape index: {}]
  %s12 = inlined_call_operand.vmem [shape: f32[1,128], index: 12, kind: input, shape index: {}]
  %s13 = inlined_call_operand.vmem [shape: f32[1,128], index: 13, kind: input, shape index: {}]
  %s14 = inlined_call_operand.<no memory space> [shape: f32[1,1], index: 14, kind: input, shape index: {}]
  %s15 = inlined_call_operand.vmem [shape: f32[16,1], index: 15, kind: output, shape index: {}]
  %s16 = sld [smem:[#allocation0]]
  $region93: #{ncf_forward_pallas.1} parent=0
    _
  %s18 = ssub.s32 1, %s16
  %s19 = scalar_select 0, %s18, %s16
  %v20 = vstv %s14
  %21 = vst [vmem:[#allocation2] sm:$0x1] %v20
  loop: start=0, step=1, limit=4
  $region2: #{ncf_forward_pallas.1} parent=0 // loop_pre_header
    _
  $region3: #{ncf_forward_pallas.1} parent=0 // loop_header
    %s23 = sphi 0, %s27
    %p24 = scmp.ge.s32.totalorder %s23, 4
    %s33 = sphi 0, %s35
    %s36 = sphi 0, %s33
    %s37 = sphi 0, %s36
    %s53 = sphi 0, %s37
    %s59 = sphi 0, %s61
    %s62 = sphi 0, %s59
    %s63 = sphi 0, %s62
    %s79 = sphi 0, %s63
    %s85 = sphi 0, %s87
    %s88 = sphi 0, %s85
    %s89 = sphi 0, %s88
    %s105 = sphi 0, %s89
    %s109 = sphi 0, %s109
    %s111 = sphi 0, %s109
    %s112 = sphi 0, %s111
    %s126 = sphi 0, %s112
    %s130 = sphi 0, %s130
    %s132 = sphi 0, %s130
    %s133 = sphi 0, %s132
    %s147 = sphi 0, %s133
    %s151 = sphi 0, %s151
    %s153 = sphi 0, %s151
    %s154 = sphi 0, %s153
    %s168 = sphi 0, %s154
    %s172 = sphi 0, %s172
    %s174 = sphi 0, %s172
    %s175 = sphi 0, %s174
    %s189 = sphi 0, %s175
    %s193 = sphi 0, %s193
    %s195 = sphi 0, %s193
    %s196 = sphi 0, %s195
    %s210 = sphi 0, %s196
    %s214 = sphi 0, %s214
    %s216 = sphi 0, %s214
    %s217 = sphi 0, %s216
    %s231 = sphi 0, %s217
    %s235 = sphi 0, %s235
    %s237 = sphi 0, %s235
    %s238 = sphi 0, %s237
    %s252 = sphi 0, %s238
    %s256 = sphi 0, %s256
    %s258 = sphi 0, %s256
    %s259 = sphi 0, %s258
    %s273 = sphi 0, %s259
    %s277 = sphi 0, %s277
    %s279 = sphi 0, %s277
    %s280 = sphi 0, %s279
    %s294 = sphi 0, %s280
    %s298 = sphi 0, %s298
    %s300 = sphi 0, %s298
    %s301 = sphi 0, %s300
    %s315 = sphi 0, %s301
    %s319 = sphi 0, %s319
    %s321 = sphi 0, %s319
    %s322 = sphi 0, %s321
    %s336 = sphi 0, %s322
    %s340 = sphi 0, %s340
    %s342 = sphi 0, %s340
    %s343 = sphi 0, %s342
    %s357 = sphi 0, %s343
    %s363 = sphi 0, %s365
    %s366 = sphi 0, %s363
    %s367 = sphi 0, %s366
    %s383 = sphi 0, %s367
  $region4: #{ncf_forward_pallas.1} parent=0 // loop_header_branch
    %26 = sbr.rel (%p24) target = $region8
  $region5: #{ncf_forward_pallas.1} parent=0 // loop_body
    %s28 = ssub.s32 %s23, 1
    %s29 = ssub.s32 %s23, 2
    %s30 = sadd.s32 %s23, 1
    %s31 = ssub.s32 %s23, %s30
    %p32 = scmp.eq.s32.totalorder %s31, 0
    %s34 = sadd.s32 %s33, 1
    %s35 = scalar_select %p32, %s33, %s34
    %p38 = pneg %p32
    %p39 = scmp.eq.s32.totalorder %s23, 1
    %p40 = por %p38, %p39
    %p41 = scmp.ne.s32.totalorder %s33, %s36
    %p42 = scmp.eq.s32.totalorder %s23, 0
    %p43 = por %p41, %p42
    %p44 = scmp.ne.s32.totalorder %s33, %s36
    %p45 = scmp.eq.s32.totalorder %s28, 1
    %p46 = por %p44, %p45
    %p47 = scmp.ne.s32.totalorder %s36, %s37
    %p48 = scmp.eq.s32.totalorder %s28, 0
    %p49 = por %p47, %p48
    %p50 = scmp.ne.s32.totalorder %s36, %s37
    %p51 = scmp.eq.s32.totalorder %s29, 1
    %p52 = por %p50, %p51
    %p54 = scmp.ne.s32.totalorder %s37, %s53
    %p55 = scmp.eq.s32.totalorder %s29, 0
    %p56 = por %p54, %p55
    %s57 = ssub.s32 %s23, %s30
    %p58 = scmp.eq.s32.totalorder %s57, 0
    %s60 = sadd.s32 %s59, 1
    %s61 = scalar_select %p58, %s59, %s60
    %p64 = pneg %p58
    %p65 = scmp.eq.s32.totalorder %s23, 1
    %p66 = por %p64, %p65
    %p67 = scmp.ne.s32.totalorder %s59, %s62
    %p68 = scmp.eq.s32.totalorder %s23, 0
    %p69 = por %p67, %p68
    %p70 = scmp.ne.s32.totalorder %s59, %s62
    %p71 = scmp.eq.s32.totalorder %s28, 1
    %p72 = por %p70, %p71
    %p73 = scmp.ne.s32.totalorder %s62, %s63
    %p74 = scmp.eq.s32.totalorder %s28, 0
    %p75 = por %p73, %p74
    %p76 = scmp.ne.s32.totalorder %s62, %s63
    %p77 = scmp.eq.s32.totalorder %s29, 1
    %p78 = por %p76, %p77
    %p80 = scmp.ne.s32.totalorder %s63, %s79
    %p81 = scmp.eq.s32.totalorder %s29, 0
    %p82 = por %p80, %p81
    %s83 = ssub.s32 %s23, %s30
    %p84 = scmp.eq.s32.totalorder %s83, 0
    %s86 = sadd.s32 %s85, 1
    %s87 = scalar_select %p84, %s85, %s86
    %p90 = pneg %p84
    %p91 = scmp.eq.s32.totalorder %s23, 1
    %p92 = por %p90, %p91
    %p93 = scmp.ne.s32.totalorder %s85, %s88
    %p94 = scmp.eq.s32.totalorder %s23, 0
    %p95 = por %p93, %p94
    %p96 = scmp.ne.s32.totalorder %s85, %s88
    %p97 = scmp.eq.s32.totalorder %s28, 1
    %p98 = por %p96, %p97
    %p99 = scmp.ne.s32.totalorder %s88, %s89
    %p100 = scmp.eq.s32.totalorder %s28, 0
    %p101 = por %p99, %p100
    %p102 = scmp.ne.s32.totalorder %s88, %s89
    %p103 = scmp.eq.s32.totalorder %s29, 1
    %p104 = por %p102, %p103
    %p106 = scmp.ne.s32.totalorder %s89, %s105
    %p107 = scmp.eq.s32.totalorder %s29, 0
    %p108 = por %p106, %p107
    %s110 = sadd.s32 %s109, 1
    %p113 = scmp.eq.s32.totalorder %s23, 1
    %p114 = scmp.ne.s32.totalorder %s109, %s111
    %p115 = scmp.eq.s32.totalorder %s23, 0
    %p116 = por %p114, %p115
    %p117 = scmp.ne.s32.totalorder %s109, %s111
    %p118 = scmp.eq.s32.totalorder %s28, 1
    %p119 = por %p117, %p118
    %p120 = scmp.ne.s32.totalorder %s111, %s112
    %p121 = scmp.eq.s32.totalorder %s28, 0
    %p122 = por %p120, %p121
    %p123 = scmp.ne.s32.totalorder %s111, %s112
    %p124 = scmp.eq.s32.totalorder %s29, 1
    %p125 = por %p123, %p124
    %p127 = scmp.ne.s32.totalorder %s112, %s126
    %p128 = scmp.eq.s32.totalorder %s29, 0
    %p129 = por %p127, %p128
    %s131 = sadd.s32 %s130, 1
    %p134 = scmp.eq.s32.totalorder %s23, 1
    %p135 = scmp.ne.s32.totalorder %s130, %s132
    %p136 = scmp.eq.s32.totalorder %s23, 0
    %p137 = por %p135, %p136
    %p138 = scmp.ne.s32.totalorder %s130, %s132
    %p139 = scmp.eq.s32.totalorder %s28, 1
    %p140 = por %p138, %p139
    %p141 = scmp.ne.s32.totalorder %s132, %s133
    %p142 = scmp.eq.s32.totalorder %s28, 0
    %p143 = por %p141, %p142
    %p144 = scmp.ne.s32.totalorder %s132, %s133
    %p145 = scmp.eq.s32.totalorder %s29, 1
    %p146 = por %p144, %p145
    %p148 = scmp.ne.s32.totalorder %s133, %s147
    %p149 = scmp.eq.s32.totalorder %s29, 0
    %p150 = por %p148, %p149
    %s152 = sadd.s32 %s151, 1
    %p155 = scmp.eq.s32.totalorder %s23, 1
    %p156 = scmp.ne.s32.totalorder %s151, %s153
    %p157 = scmp.eq.s32.totalorder %s23, 0
    %p158 = por %p156, %p157
    %p159 = scmp.ne.s32.totalorder %s151, %s153
    %p160 = scmp.eq.s32.totalorder %s28, 1
    %p161 = por %p159, %p160
    %p162 = scmp.ne.s32.totalorder %s153, %s154
    %p163 = scmp.eq.s32.totalorder %s28, 0
    %p164 = por %p162, %p163
    %p165 = scmp.ne.s32.totalorder %s153, %s154
    %p166 = scmp.eq.s32.totalorder %s29, 1
    %p167 = por %p165, %p166
    %p169 = scmp.ne.s32.totalorder %s154, %s168
    %p170 = scmp.eq.s32.totalorder %s29, 0
    %p171 = por %p169, %p170
    %s173 = sadd.s32 %s172, 1
    %p176 = scmp.eq.s32.totalorder %s23, 1
    %p177 = scmp.ne.s32.totalorder %s172, %s174
    %p178 = scmp.eq.s32.totalorder %s23, 0
    %p179 = por %p177, %p178
    %p180 = scmp.ne.s32.totalorder %s172, %s174
    %p181 = scmp.eq.s32.totalorder %s28, 1
    %p182 = por %p180, %p181
    %p183 = scmp.ne.s32.totalorder %s174, %s175
    %p184 = scmp.eq.s32.totalorder %s28, 0
    %p185 = por %p183, %p184
    %p186 = scmp.ne.s32.totalorder %s174, %s175
    %p187 = scmp.eq.s32.totalorder %s29, 1
    %p188 = por %p186, %p187
    %p190 = scmp.ne.s32.totalorder %s175, %s189
    %p191 = scmp.eq.s32.totalorder %s29, 0
    %p192 = por %p190, %p191
    %s194 = sadd.s32 %s193, 1
    %p197 = scmp.eq.s32.totalorder %s23, 1
    %p198 = scmp.ne.s32.totalorder %s193, %s195
    %p199 = scmp.eq.s32.totalorder %s23, 0
    %p200 = por %p198, %p199
    %p201 = scmp.ne.s32.totalorder %s193, %s195
    %p202 = scmp.eq.s32.totalorder %s28, 1
    %p203 = por %p201, %p202
    %p204 = scmp.ne.s32.totalorder %s195, %s196
    %p205 = scmp.eq.s32.totalorder %s28, 0
    %p206 = por %p204, %p205
    %p207 = scmp.ne.s32.totalorder %s195, %s196
    %p208 = scmp.eq.s32.totalorder %s29, 1
    %p209 = por %p207, %p208
    %p211 = scmp.ne.s32.totalorder %s196, %s210
    %p212 = scmp.eq.s32.totalorder %s29, 0
    %p213 = por %p211, %p212
    %s215 = sadd.s32 %s214, 1
    %p218 = scmp.eq.s32.totalorder %s23, 1
    %p219 = scmp.ne.s32.totalorder %s214, %s216
    %p220 = scmp.eq.s32.totalorder %s23, 0
    %p221 = por %p219, %p220
    %p222 = scmp.ne.s32.totalorder %s214, %s216
    %p223 = scmp.eq.s32.totalorder %s28, 1
    %p224 = por %p222, %p223
    %p225 = scmp.ne.s32.totalorder %s216, %s217
    %p226 = scmp.eq.s32.totalorder %s28, 0
    %p227 = por %p225, %p226
    %p228 = scmp.ne.s32.totalorder %s216, %s217
    %p229 = scmp.eq.s32.totalorder %s29, 1
    %p230 = por %p228, %p229
    %p232 = scmp.ne.s32.totalorder %s217, %s231
    %p233 = scmp.eq.s32.totalorder %s29, 0
    %p234 = por %p232, %p233
    %s236 = sadd.s32 %s235, 1
    %p239 = scmp.eq.s32.totalorder %s23, 1
    %p240 = scmp.ne.s32.totalorder %s235, %s237
    %p241 = scmp.eq.s32.totalorder %s23, 0
    %p242 = por %p240, %p241
    %p243 = scmp.ne.s32.totalorder %s235, %s237
    %p244 = scmp.eq.s32.totalorder %s28, 1
    %p245 = por %p243, %p244
    %p246 = scmp.ne.s32.totalorder %s237, %s238
    %p247 = scmp.eq.s32.totalorder %s28, 0
    %p248 = por %p246, %p247
    %p249 = scmp.ne.s32.totalorder %s237, %s238
    %p250 = scmp.eq.s32.totalorder %s29, 1
    %p251 = por %p249, %p250
    %p253 = scmp.ne.s32.totalorder %s238, %s252
    %p254 = scmp.eq.s32.totalorder %s29, 0
    %p255 = por %p253, %p254
    %s257 = sadd.s32 %s256, 1
    %p260 = scmp.eq.s32.totalorder %s23, 1
    %p261 = scmp.ne.s32.totalorder %s256, %s258
    %p262 = scmp.eq.s32.totalorder %s23, 0
    %p263 = por %p261, %p262
    %p264 = scmp.ne.s32.totalorder %s256, %s258
    %p265 = scmp.eq.s32.totalorder %s28, 1
    %p266 = por %p264, %p265
    %p267 = scmp.ne.s32.totalorder %s258, %s259
    %p268 = scmp.eq.s32.totalorder %s28, 0
    %p269 = por %p267, %p268
    %p270 = scmp.ne.s32.totalorder %s258, %s259
    %p271 = scmp.eq.s32.totalorder %s29, 1
    %p272 = por %p270, %p271
    %p274 = scmp.ne.s32.totalorder %s259, %s273
    %p275 = scmp.eq.s32.totalorder %s29, 0
    %p276 = por %p274, %p275
    %s278 = sadd.s32 %s277, 1
    %p281 = scmp.eq.s32.totalorder %s23, 1
    %p282 = scmp.ne.s32.totalorder %s277, %s279
    %p283 = scmp.eq.s32.totalorder %s23, 0
    %p284 = por %p282, %p283
    %p285 = scmp.ne.s32.totalorder %s277, %s279
    %p286 = scmp.eq.s32.totalorder %s28, 1
    %p287 = por %p285, %p286
    %p288 = scmp.ne.s32.totalorder %s279, %s280
    %p289 = scmp.eq.s32.totalorder %s28, 0
    %p290 = por %p288, %p289
    %p291 = scmp.ne.s32.totalorder %s279, %s280
    %p292 = scmp.eq.s32.totalorder %s29, 1
    %p293 = por %p291, %p292
    %p295 = scmp.ne.s32.totalorder %s280, %s294
    %p296 = scmp.eq.s32.totalorder %s29, 0
    %p297 = por %p295, %p296
    %s299 = sadd.s32 %s298, 1
    %p302 = scmp.eq.s32.totalorder %s23, 1
    %p303 = scmp.ne.s32.totalorder %s298, %s300
    %p304 = scmp.eq.s32.totalorder %s23, 0
    %p305 = por %p303, %p304
    %p306 = scmp.ne.s32.totalorder %s298, %s300
    %p307 = scmp.eq.s32.totalorder %s28, 1
    %p308 = por %p306, %p307
    %p309 = scmp.ne.s32.totalorder %s300, %s301
    %p310 = scmp.eq.s32.totalorder %s28, 0
    %p311 = por %p309, %p310
    %p312 = scmp.ne.s32.totalorder %s300, %s301
    %p313 = scmp.eq.s32.totalorder %s29, 1
    %p314 = por %p312, %p313
    %p316 = scmp.ne.s32.totalorder %s301, %s315
    %p317 = scmp.eq.s32.totalorder %s29, 0
    %p318 = por %p316, %p317
    %s320 = sadd.s32 %s319, 1
    %p323 = scmp.eq.s32.totalorder %s23, 1
    %p324 = scmp.ne.s32.totalorder %s319, %s321
    %p325 = scmp.eq.s32.totalorder %s23, 0
    %p326 = por %p324, %p325
    %p327 = scmp.ne.s32.totalorder %s319, %s321
    %p328 = scmp.eq.s32.totalorder %s28, 1
    %p329 = por %p327, %p328
    %p330 = scmp.ne.s32.totalorder %s321, %s322
    %p331 = scmp.eq.s32.totalorder %s28, 0
    %p332 = por %p330, %p331
    %p333 = scmp.ne.s32.totalorder %s321, %s322
    %p334 = scmp.eq.s32.totalorder %s29, 1
    %p335 = por %p333, %p334
    %p337 = scmp.ne.s32.totalorder %s322, %s336
    %p338 = scmp.eq.s32.totalorder %s29, 0
    %p339 = por %p337, %p338
    %s341 = sadd.s32 %s340, 1
    %p344 = scmp.eq.s32.totalorder %s23, 1
    %p345 = scmp.ne.s32.totalorder %s340, %s342
    %p346 = scmp.eq.s32.totalorder %s23, 0
    %p347 = por %p345, %p346
    %p348 = scmp.ne.s32.totalorder %s340, %s342
    %p349 = scmp.eq.s32.totalorder %s28, 1
    %p350 = por %p348, %p349
    %p351 = scmp.ne.s32.totalorder %s342, %s343
    %p352 = scmp.eq.s32.totalorder %s28, 0
    %p353 = por %p351, %p352
    %p354 = scmp.ne.s32.totalorder %s342, %s343
    %p355 = scmp.eq.s32.totalorder %s29, 1
    %p356 = por %p354, %p355
    %p358 = scmp.ne.s32.totalorder %s343, %s357
    %p359 = scmp.eq.s32.totalorder %s29, 0
    %p360 = por %p358, %p359
    %s361 = ssub.s32 %s23, %s30
    %p362 = scmp.eq.s32.totalorder %s361, 0
    %s364 = sadd.s32 %s363, 1
    %s365 = scalar_select %p362, %s363, %s364
    %p368 = pneg %p362
    %p369 = scmp.eq.s32.totalorder %s23, 1
    %p370 = por %p368, %p369
    %p371 = scmp.ne.s32.totalorder %s363, %s366
    %p372 = scmp.eq.s32.totalorder %s23, 0
    %p373 = por %p371, %p372
    %p374 = scmp.ne.s32.totalorder %s363, %s366
    %p375 = scmp.eq.s32.totalorder %s28, 1
    %p376 = por %p374, %p375
    %p377 = scmp.ne.s32.totalorder %s366, %s367
    %p378 = scmp.eq.s32.totalorder %s28, 0
    %p379 = por %p377, %p378
    %p380 = scmp.ne.s32.totalorder %s366, %s367
    %p381 = scmp.eq.s32.totalorder %s29, 1
    %p382 = por %p380, %p381
    %p384 = scmp.ne.s32.totalorder %s367, %s383
    %p385 = scmp.eq.s32.totalorder %s29, 0
    %p386 = por %p384, %p385
    %p387 = scmp.le.s32.totalorder 1, %s23
    %p388 = scmp.lt.s32.totalorder %s23, 3
    %p389 = pnand %p387, %p388
    %p390 = pneg %p389
    // Predicated region
    $region9: #{ncf_forward_pallas.1} parent=5 // pred_check
      _
    $region10: #{ncf_forward_pallas.1} parent=5 // pred_check_branch
      %392 = sbr.rel (%p389) target = $region12
    $region11: #{ncf_forward_pallas.1} parent=5 // pred_region
      %s393 = ssub.s32 %s23, 1
      // Predicated region
      $region13: #{ncf_forward_pallas.1} parent=11 // pred_check
        %p394 = pneg %p122
      $region14: #{ncf_forward_pallas.1} parent=11 // pred_check_branch
        %396 = sbr.rel (%p394) target = $region16
      $region15: #{ncf_forward_pallas.1} parent=11 // pred_region
        _
      $region16: #{ncf_forward_pallas.1} parent=11 // pred_fallthru
        _
      // Predicated region
      $region17: #{ncf_forward_pallas.1} parent=11 // pred_check
        %p397 = pneg %p143
      $region18: #{ncf_forward_pallas.1} parent=11 // pred_check_branch
        %399 = sbr.rel (%p397) target = $region20
      $region19: #{ncf_forward_pallas.1} parent=11 // pred_region
        _
      $region20: #{ncf_forward_pallas.1} parent=11 // pred_fallthru
        _
      // Predicated region
      $region21: #{ncf_forward_pallas.1} parent=11 // pred_check
        %p400 = pneg %p164
      $region22: #{ncf_forward_pallas.1} parent=11 // pred_check_branch
        %402 = sbr.rel (%p400) target = $region24
      $region23: #{ncf_forward_pallas.1} parent=11 // pred_region
        _
      $region24: #{ncf_forward_pallas.1} parent=11 // pred_fallthru
        _
      // Predicated region
      $region25: #{ncf_forward_pallas.1} parent=11 // pred_check
        %p403 = pneg %p185
      $region26: #{ncf_forward_pallas.1} parent=11 // pred_check_branch
        %405 = sbr.rel (%p403) target = $region28
      $region27: #{ncf_forward_pallas.1} parent=11 // pred_region
        _
      $region28: #{ncf_forward_pallas.1} parent=11 // pred_fallthru
        _
      // Predicated region
      $region29: #{ncf_forward_pallas.1} parent=11 // pred_check
        %p406 = pneg %p206
      $region30: #{ncf_forward_pallas.1} parent=11 // pred_check_branch
        %408 = sbr.rel (%p406) target = $region32
      $region31: #{ncf_forward_pallas.1} parent=11 // pred_region
        _
      $region32: #{ncf_forward_pallas.1} parent=11 // pred_fallthru
        _
      // Predicated region
      $region33: #{ncf_forward_pallas.1} parent=11 // pred_check
        %p409 = pneg %p227
      $region34: #{ncf_forward_pallas.1} parent=11 // pred_check_branch
        %411 = sbr.rel (%p409) target = $region36
      $region35: #{ncf_forward_pallas.1} parent=11 // pred_region
        _
      $region36: #{ncf_forward_pallas.1} parent=11 // pred_fallthru
        _
      // Predicated region
      $region37: #{ncf_forward_pallas.1} parent=11 // pred_check
        %p412 = pneg %p248
      $region38: #{ncf_forward_pallas.1} parent=11 // pred_check_branch
        %414 = sbr.rel (%p412) target = $region40
      $region39: #{ncf_forward_pallas.1} parent=11 // pred_region
        _
      $region40: #{ncf_forward_pallas.1} parent=11 // pred_fallthru
        _
      // Predicated region
      $region41: #{ncf_forward_pallas.1} parent=11 // pred_check
        %p415 = pneg %p269
      $region42: #{ncf_forward_pallas.1} parent=11 // pred_check_branch
        %417 = sbr.rel (%p415) target = $region44
      $region43: #{ncf_forward_pallas.1} parent=11 // pred_region
        _
      $region44: #{ncf_forward_pallas.1} parent=11 // pred_fallthru
        _
      // Predicated region
      $region45: #{ncf_forward_pallas.1} parent=11 // pred_check
        %p418 = pneg %p290
      $region46: #{ncf_forward_pallas.1} parent=11 // pred_check_branch
        %420 = sbr.rel (%p418) target = $region48
      $region47: #{ncf_forward_pallas.1} parent=11 // pred_region
        _
      $region48: #{ncf_forward_pallas.1} parent=11 // pred_fallthru
        _
      // Predicated region
      $region49: #{ncf_forward_pallas.1} parent=11 // pred_check
        %p421 = pneg %p311
      $region50: #{ncf_forward_pallas.1} parent=11 // pred_check_branch
        %423 = sbr.rel (%p421) target = $region52
      $region51: #{ncf_forward_pallas.1} parent=11 // pred_region
        _
      $region52: #{ncf_forward_pallas.1} parent=11 // pred_fallthru
        _
      // Predicated region
      $region53: #{ncf_forward_pallas.1} parent=11 // pred_check
        %p424 = pneg %p332
      $region54: #{ncf_forward_pallas.1} parent=11 // pred_check_branch
        %426 = sbr.rel (%p424) target = $region56
      $region55: #{ncf_forward_pallas.1} parent=11 // pred_region
        _
      $region56: #{ncf_forward_pallas.1} parent=11 // pred_fallthru
        _
      // Predicated region
      $region57: #{ncf_forward_pallas.1} parent=11 // pred_check
        %p427 = pneg %p353
      $region58: #{ncf_forward_pallas.1} parent=11 // pred_check_branch
        %429 = sbr.rel (%p427) target = $region60
      $region59: #{ncf_forward_pallas.1} parent=11 // pred_region
        _
      $region60: #{ncf_forward_pallas.1} parent=11 // pred_fallthru
        _
    $region12: #{ncf_forward_pallas.1} parent=5 // pred_fallthru
      _
    %p430 = scmp.lt.s32.totalorder %s23, 2
    // Predicated region
    $region61: #{ncf_forward_pallas.1} parent=5 // pred_check
      %p431 = pneg %p430
    $region62: #{ncf_forward_pallas.1} parent=5 // pred_check_branch
      %433 = sbr.rel (%p431) target = $region64
    $region63: #{ncf_forward_pallas.1} parent=5 // pred_region
      // Predicated region
      $region65: #{ncf_forward_pallas.1} parent=63 // pred_check
        %p434 = pneg %p43
      $region66: #{ncf_forward_pallas.1} parent=63 // pred_check_branch
        %436 = sbr.rel (%p434) target = $region68
      $region67: #{ncf_forward_pallas.1} parent=63 // pred_region
        %p437 = scmp.lt.s32.totalorder %s23, 1
        %s438 = scalar_select %p437, %s23, 1
        %s439 = smul.addr %s438, 8
        %s440 = scalar_lea.vmem %s0, %s439
      $region68: #{ncf_forward_pallas.1} parent=63 // pred_fallthru
        _
      // Predicated region
      $region69: #{ncf_forward_pallas.1} parent=63 // pred_check
        %p441 = pneg %p69
      $region70: #{ncf_forward_pallas.1} parent=63 // pred_check_branch
        %443 = sbr.rel (%p441) target = $region72
      $region71: #{ncf_forward_pallas.1} parent=63 // pred_region
        %p444 = scmp.lt.s32.totalorder %s23, 1
        %s445 = scalar_select %p444, %s23, 1
        %s446 = smul.addr %s445, 8
        %s447 = scalar_lea.vmem %s1, %s446
      $region72: #{ncf_forward_pallas.1} parent=63 // pred_fallthru
        _
      // Predicated region
      $region73: #{ncf_forward_pallas.1} parent=63 // pred_check
        %p448 = pneg %p95
      $region74: #{ncf_forward_pallas.1} parent=63 // pred_check_branch
        %450 = sbr.rel (%p448) target = $region76
      $region75: #{ncf_forward_pallas.1} parent=63 // pred_region
        %p451 = scmp.lt.s32.totalorder %s23, 1
        %s452 = scalar_select %p451, %s23, 1
        %s453 = smul.addr %s452, 8
        %s454 = scalar_lea.vmem %s2, %s453
      $region76: #{ncf_forward_pallas.1} parent=63 // pred_fallthru
        _
    $region64: #{ncf_forward_pallas.1} parent=5 // pred_fallthru
      _
    %p455 = scmp.le.s32.totalorder 1, %s23
    %p456 = scmp.lt.s32.totalorder %s23, 3
    %p457 = pnand %p455, %p456
    %p458 = pneg %p457
    // Predicated region
    $region77: #{ncf_forward_pallas.1} parent=5 // pred_check
      _
    $region78: #{ncf_forward_pallas.1} parent=5 // pred_check_branch
      %460 = sbr.rel (%p457) target = $region80
    $region79: #{ncf_forward_pallas.1} parent=5 // pred_region
      %s461 = ssub.s32 %s23, 1
      %p462 = scmp.lt.s32.totalorder %s28, 1
      %s463 = scalar_select %p462, %s28, 1
      %s464 = smul.addr %s463, 8
      %s465 = scalar_lea.vmem %s0, %s464
      %p466 = pneg %p49
      %p467 = pneg %p46
      %p468 = scmp.lt.s32.totalorder %s28, 1
      %s469 = scalar_select %p468, %s28, 1
      %s470 = smul.addr %s469, 8
      %s471 = scalar_lea.vmem %s1, %s470
      %p472 = pneg %p75
      %p473 = pneg %p72
      %p474 = scmp.lt.s32.totalorder %s28, 1
      %s475 = scalar_select %p474, %s28, 1
      %s476 = smul.addr %s475, 8
      %s477 = scalar_lea.vmem %s2, %s476
      %p478 = pneg %p101
      %p479 = pneg %p98
      %p480 = pneg %p122
      %p481 = pneg %p119
      %p482 = pneg %p143
      %p483 = pneg %p140
      %p484 = pneg %p164
      %p485 = pneg %p161
      %p486 = pneg %p185
      %p487 = pneg %p182
      %p488 = pneg %p206
      %p489 = pneg %p203
      %p490 = pneg %p227
      %p491 = pneg %p224
      %p492 = pneg %p248
      %p493 = pneg %p245
      %p494 = pneg %p269
      %p495 = pneg %p266
      %p496 = pneg %p290
      %p497 = pneg %p287
      %p498 = pneg %p311
      %p499 = pneg %p308
      %p500 = pneg %p332
      %p501 = pneg %p329
      %p502 = pneg %p353
      %p503 = pneg %p350
      %p504 = pneg %p379
      %p505 = pneg %p376
      %p506 = scmp.lt.s32.totalorder %s28, 1
      %s507 = scalar_select %p506, %s28, 1
      %s508 = smul.addr %s507, 8
      %s509 = scalar_lea.vmem %s15, %s508
      %p510 = scmp.lt.s32.totalorder %s28, 1
      %s511 = scalar_select %p510, %s28, 1
      %s512 = smul.addr %s511, 8
      %s513 = scalar_lea.vmem %s0, %s512
      %p514 = scmp.lt.s32.totalorder %s28, 1
      %s515 = scalar_select %p514, %s28, 1
      %s516 = smul.addr %s515, 8
      %s517 = scalar_lea.vmem %s1, %s516
      %p518 = scmp.lt.s32.totalorder %s28, 1
      %s519 = scalar_select %p518, %s28, 1
      %s520 = smul.addr %s519, 8
      %s521 = scalar_lea.vmem %s2, %s520
      %p522 = scmp.lt.s32.totalorder %s28, 1
      %s523 = scalar_select %p522, %s28, 1
      %s524 = smul.addr %s523, 8
      %s525 = scalar_lea.vmem %s15, %s524
      %v526 = vld [vmem:[%s513] sm:$0xff]
      %v527 = vld [vmem:[%s517] sm:$0xff]
      %v528 = vld [vmem:[%s521] sm:$0xff]
      %v529 = vmul.f32 %v526, %v527
      %v530 = vmul.f32 %v526, %v528
      %v531 = vld [vmem:[%s3] sm:$0xff]
      %v532 = vld [vmem:[%s3 + $0x8] sm:$0xff]
      %v533 = vld [vmem:[%s3 + $0x10] sm:$0xff]
      %v534 = vld [vmem:[%s3 + $0x18] sm:$0xff]
      %v535 = vld [vmem:[%s3 + $0x20] sm:$0xff]
      %v536 = vld [vmem:[%s3 + $0x28] sm:$0xff]
      %v537 = vld [vmem:[%s3 + $0x30] sm:$0xff]
      %v538 = vld [vmem:[%s3 + $0x38] sm:$0xff]
      %v539 = vld [vmem:[%s3 + $0x40] sm:$0xff]
      %v540 = vld [vmem:[%s3 + $0x48] sm:$0xff]
      %v541 = vld [vmem:[%s3 + $0x50] sm:$0xff]
      %v542 = vld [vmem:[%s3 + $0x58] sm:$0xff]
      %v543 = vld [vmem:[%s3 + $0x60] sm:$0xff]
      %v544 = vld [vmem:[%s3 + $0x68] sm:$0xff]
      %v545 = vld [vmem:[%s3 + $0x70] sm:$0xff]
      %v546 = vld [vmem:[%s3 + $0x78] sm:$0xff]
      %547 = vmatpush.msra.mxu0 %v546
      %548 = vmatpush.msra.mxu0 %v545
      %549 = vmatpush.msra.mxu0 %v544
      %550 = vmatpush.msra.mxu0 %v543
      %551 = vmatpush.msra.mxu0 %v542
      %552 = vmatpush.msra.mxu0 %v541
      %553 = vmatpush.msra.mxu0 %v540
      %554 = vmatpush.msra.mxu0 %v539
      %555 = vmatpush.msra.mxu0 %v538
      %556 = vmatpush.msra.mxu0 %v537
      %557 = vmatpush.msra.mxu0 %v536
      %558 = vmatpush.msra.mxu0 %v535
      %559 = vmatpush.msra.mxu0 %v534
      %560 = vmatpush.msra.mxu0 %v533
      %561 = vmatpush.msra.mxu0 %v532
      %562 = vmatpush.msra.mxu0 %v531
      %563 = vmatmul.f32.gmra.mxu0 %v526
      %v564 = vpop.f32.mrf.mxu0
      %v565 = vadd.f32 0.0, %v564
      %566 = vdwg.mxu0
      %v567 = vld [vmem:[%s4] sm:$0xff]
      %v568 = vld [vmem:[%s4 + $0x8] sm:$0xff]
      %v569 = vld [vmem:[%s4 + $0x10] sm:$0xff]
      %v570 = vld [vmem:[%s4 + $0x18] sm:$0xff]
      %v571 = vld [vmem:[%s4 + $0x20] sm:$0xff]
      %v572 = vld [vmem:[%s4 + $0x28] sm:$0xff]
      %v573 = vld [vmem:[%s4 + $0x30] sm:$0xff]
      %v574 = vld [vmem:[%s4 + $0x38] sm:$0xff]
      %v575 = vld [vmem:[%s4 + $0x40] sm:$0xff]
      %v576 = vld [vmem:[%s4 + $0x48] sm:$0xff]
      %v577 = vld [vmem:[%s4 + $0x50] sm:$0xff]
      %v578 = vld [vmem:[%s4 + $0x58] sm:$0xff]
      %v579 = vld [vmem:[%s4 + $0x60] sm:$0xff]
      %v580 = vld [vmem:[%s4 + $0x68] sm:$0xff]
      %v581 = vld [vmem:[%s4 + $0x70] sm:$0xff]
      %v582 = vld [vmem:[%s4 + $0x78] sm:$0xff]
      %583 = vmatpush.msra.mxu0 %v582
      %584 = vmatpush.msra.mxu0 %v581
      %585 = vmatpush.msra.mxu0 %v580
      %586 = vmatpush.msra.mxu0 %v579
      %587 = vmatpush.msra.mxu0 %v578
      %588 = vmatpush.msra.mxu0 %v577
      %589 = vmatpush.msra.mxu0 %v576
      %590 = vmatpush.msra.mxu0 %v575
      %591 = vmatpush.msra.mxu0 %v574
      %592 = vmatpush.msra.mxu0 %v573
      %593 = vmatpush.msra.mxu0 %v572
      %594 = vmatpush.msra.mxu0 %v571
      %595 = vmatpush.msra.mxu0 %v570
      %596 = vmatpush.msra.mxu0 %v569
      %597 = vmatpush.msra.mxu0 %v568
      %598 = vmatpush.msra.mxu0 %v567
      %599 = vmatmul.f32.gmra.mxu0 %v527
      %v600 = vpop.f32.mrf.mxu0
      %v601 = vadd.f32 0.0, %v600
      %602 = vmatmul.f32.gmra.mxu0 %v528
      %v603 = vpop.f32.mrf.mxu0
      %v604 = vadd.f32 0.0, %v603
      %605 = vdwg.mxu0
      %v606 = vadd.f32 %v565, %v601
      %v607 = vadd.f32 %v565, %v604
      %v608 = vld [vmem:[%s5] sm:$0x1]
      %v610 = vperm.slane %v608, 0
      %v612 = vadd.f32 %v606, %v610
      %v613 = vadd.f32 %v607, %v610
      %v614 = vmax.f32 %v612, 0.0
      %v615 = vmax.f32 %v613, 0.0
      %v616 = vld [vmem:[%s6] sm:$0xff]
      %v617 = vld [vmem:[%s6 + $0x8] sm:$0xff]
      %v618 = vld [vmem:[%s6 + $0x10] sm:$0xff]
      %v619 = vld [vmem:[%s6 + $0x18] sm:$0xff]
      %v620 = vld [vmem:[%s6 + $0x20] sm:$0xff]
      %v621 = vld [vmem:[%s6 + $0x28] sm:$0xff]
      %v622 = vld [vmem:[%s6 + $0x30] sm:$0xff]
      %v623 = vld [vmem:[%s6 + $0x38] sm:$0xff]
      %v624 = vld [vmem:[%s6 + $0x40] sm:$0xff]
      %v625 = vld [vmem:[%s6 + $0x48] sm:$0xff]
      %v626 = vld [vmem:[%s6 + $0x50] sm:$0xff]
      %v627 = vld [vmem:[%s6 + $0x58] sm:$0xff]
      %v628 = vld [vmem:[%s6 + $0x60] sm:$0xff]
      %v629 = vld [vmem:[%s6 + $0x68] sm:$0xff]
      %v630 = vld [vmem:[%s6 + $0x70] sm:$0xff]
      %v631 = vld [vmem:[%s6 + $0x78] sm:$0xff]
      %v632 = vld [vmem:[%s7] sm:$0x1]
      %v634 = vperm.slane %v632, 0
      %636 = vmatpush.msra.mxu0 %v631
      %637 = vmatpush.msra.mxu0 %v630
      %638 = vmatpush.msra.mxu0 %v629
      %639 = vmatpush.msra.mxu0 %v628
      %640 = vmatpush.msra.mxu0 %v627
      %641 = vmatpush.msra.mxu0 %v626
      %642 = vmatpush.msra.mxu0 %v625
      %643 = vmatpush.msra.mxu0 %v624
      %644 = vmatpush.msra.mxu0 %v623
      %645 = vmatpush.msra.mxu0 %v622
      %646 = vmatpush.msra.mxu0 %v621
      %647 = vmatpush.msra.mxu0 %v620
      %648 = vmatpush.msra.mxu0 %v619
      %649 = vmatpush.msra.mxu0 %v618
      %650 = vmatpush.msra.mxu0 %v617
      %651 = vmatpush.msra.mxu0 %v616
      %652 = vmatmul.f32.gmra.mxu0 %v614
      %v653 = vpop.f32.mrf.mxu0
      %v654 = vadd.f32 %v634, %v653
      %655 = vmatmul.f32.gmra.mxu0 %v615
      %v656 = vpop.f32.mrf.mxu0
      %v657 = vadd.f32 %v634, %v656
      %658 = vdwg.mxu0
      %v659 = vmax.f32 %v654, 0.0
      %v660 = vmax.f32 %v657, 0.0
      %v661 = vld [vmem:[%s8] sm:$0xff]
      %v662 = vld [vmem:[%s8 + $0x8] sm:$0xff]
      %v663 = vld [vmem:[%s8 + $0x10] sm:$0xff]
      %v664 = vld [vmem:[%s8 + $0x18] sm:$0xff]
      %v665 = vld [vmem:[%s8 + $0x20] sm:$0xff]
      %v666 = vld [vmem:[%s8 + $0x28] sm:$0xff]
      %v667 = vld [vmem:[%s8 + $0x30] sm:$0xff]
      %v668 = vld [vmem:[%s8 + $0x38] sm:$0xff]
      %v669 = vld [vmem:[%s8 + $0x40] sm:$0xff]
      %v670 = vld [vmem:[%s8 + $0x48] sm:$0xff]
      %v671 = vld [vmem:[%s8 + $0x50] sm:$0xff]
      %v672 = vld [vmem:[%s8 + $0x58] sm:$0xff]
      %v673 = vld [vmem:[%s8 + $0x60] sm:$0xff]
      %v674 = vld [vmem:[%s8 + $0x68] sm:$0xff]
      %v675 = vld [vmem:[%s8 + $0x70] sm:$0xff]
      %v676 = vld [vmem:[%s8 + $0x78] sm:$0xff]
      %v677 = vld [vmem:[%s9] sm:$0x1]
      %v679 = vperm.slane %v677, 0
      %681 = vmatpush.msra.mxu0 %v676
      %682 = vmatpush.msra.mxu0 %v675
      %683 = vmatpush.msra.mxu0 %v674
      %684 = vmatpush.msra.mxu0 %v673
      %685 = vmatpush.msra.mxu0 %v672
      %686 = vmatpush.msra.mxu0 %v671
      %687 = vmatpush.msra.mxu0 %v670
      %688 = vmatpush.msra.mxu0 %v669
      %689 = vmatpush.msra.mxu0 %v668
      %690 = vmatpush.msra.mxu0 %v667
      %691 = vmatpush.msra.mxu0 %v666
      %692 = vmatpush.msra.mxu0 %v665
      %693 = vmatpush.msra.mxu0 %v664
      %694 = vmatpush.msra.mxu0 %v663
      %695 = vmatpush.msra.mxu0 %v662
      %696 = vmatpush.msra.mxu0 %v661
      %697 = vmatmul.f32.gmra.mxu0 %v659
      %v698 = vpop.f32.mrf.mxu0
      %v699 = vadd.f32 %v679, %v698
      %700 = vmatmul.f32.gmra.mxu0 %v660
      %v701 = vpop.f32.mrf.mxu0
      %v702 = vadd.f32 %v679, %v701
      %703 = vdwg.mxu0
      %v704 = vld [vmem:[%s10] sm:$0xff]
      %v705 = vld [vmem:[%s10 + $0x8] sm:$0xff]
      %v706 = vld [vmem:[%s10 + $0x10] sm:$0xff]
      %v707 = vld [vmem:[%s10 + $0x18] sm:$0xff]
      %v708 = vld [vmem:[%s10 + $0x20] sm:$0xff]
      %v709 = vld [vmem:[%s10 + $0x28] sm:$0xff]
      %v710 = vld [vmem:[%s10 + $0x30] sm:$0xff]
      %v711 = vld [vmem:[%s10 + $0x38] sm:$0xff]
      %v712 = vld [vmem:[%s10 + $0x40] sm:$0xff]
      %v713 = vld [vmem:[%s10 + $0x48] sm:$0xff]
      %v714 = vld [vmem:[%s10 + $0x50] sm:$0xff]
      %v715 = vld [vmem:[%s10 + $0x58] sm:$0xff]
      %v716 = vld [vmem:[%s10 + $0x60] sm:$0xff]
      %v717 = vld [vmem:[%s10 + $0x68] sm:$0xff]
      %v718 = vld [vmem:[%s10 + $0x70] sm:$0xff]
      %v719 = vld [vmem:[%s10 + $0x78] sm:$0xff]
      %v720 = vld [vmem:[%s11] sm:$0xff]
      %v721 = vld [vmem:[%s11 + $0x8] sm:$0xff]
      %v722 = vld [vmem:[%s11 + $0x10] sm:$0xff]
      %v723 = vld [vmem:[%s11 + $0x18] sm:$0xff]
      %v724 = vld [vmem:[%s11 + $0x20] sm:$0xff]
      %v725 = vld [vmem:[%s11 + $0x28] sm:$0xff]
      %v726 = vld [vmem:[%s11 + $0x30] sm:$0xff]
      %v727 = vld [vmem:[%s11 + $0x38] sm:$0xff]
      %v728 = vld [vmem:[%s11 + $0x40] sm:$0xff]
      %v729 = vld [vmem:[%s11 + $0x48] sm:$0xff]
      %v730 = vld [vmem:[%s11 + $0x50] sm:$0xff]
      %v731 = vld [vmem:[%s11 + $0x58] sm:$0xff]
      %v732 = vld [vmem:[%s11 + $0x60] sm:$0xff]
      %v733 = vld [vmem:[%s11 + $0x68] sm:$0xff]
      %v734 = vld [vmem:[%s11 + $0x70] sm:$0xff]
      %v735 = vld [vmem:[%s11 + $0x78] sm:$0xff]
      %736 = vmatpush.msra.mxu0 %v735
      %737 = vmatpush.msra.mxu0 %v734
      %738 = vmatpush.msra.mxu0 %v733
      %739 = vmatpush.msra.mxu0 %v732
      %740 = vmatpush.msra.mxu0 %v731
      %741 = vmatpush.msra.mxu0 %v730
      %742 = vmatpush.msra.mxu0 %v729
      %743 = vmatpush.msra.mxu0 %v728
      %744 = vmatpush.msra.mxu0 %v727
      %745 = vmatpush.msra.mxu0 %v726
      %746 = vmatpush.msra.mxu0 %v725
      %747 = vmatpush.msra.mxu0 %v724
      %748 = vmatpush.msra.mxu0 %v723
      %749 = vmatpush.msra.mxu0 %v722
      %750 = vmatpush.msra.mxu0 %v721
      %751 = vmatpush.msra.mxu0 %v720
      %752 = vmatmul.f32.gmra.mxu0 %v699
      %v753 = vpop.f32.mrf.mxu0
      %v754 = vadd.f32 0.0, %v753
      %755 = vmatmul.f32.gmra.mxu0 %v702
      %v756 = vpop.f32.mrf.mxu0
      %v757 = vadd.f32 0.0, %v756
      %758 = vdwg.mxu0
      %759 = vmatpush.msra.mxu0 %v719
      %760 = vmatpush.msra.mxu0 %v718
      %761 = vmatpush.msra.mxu0 %v717
      %762 = vmatpush.msra.mxu0 %v716
      %763 = vmatpush.msra.mxu0 %v715
      %764 = vmatpush.msra.mxu0 %v714
      %765 = vmatpush.msra.mxu0 %v713
      %766 = vmatpush.msra.mxu0 %v712
      %767 = vmatpush.msra.mxu0 %v711
      %768 = vmatpush.msra.mxu0 %v710
      %769 = vmatpush.msra.mxu0 %v709
      %770 = vmatpush.msra.mxu0 %v708
      %771 = vmatpush.msra.mxu0 %v707
      %772 = vmatpush.msra.mxu0 %v706
      %773 = vmatpush.msra.mxu0 %v705
      %774 = vmatpush.msra.mxu0 %v704
      %775 = vmatmul.f32.gmra.mxu0 %v529
      %v776 = vpop.f32.mrf.mxu0
      %v777 = vadd.f32 %v754, %v776
      %778 = vmatmul.f32.gmra.mxu0 %v530
      %v779 = vpop.f32.mrf.mxu0
      %v780 = vadd.f32 %v757, %v779
      %781 = vdwg.mxu0
      %v782 = vld [vmem:[%s12] sm:$0x1]
      %v784 = vperm.slane %v782, 0
      %v786 = vadd.f32 %v777, %v784
      %v787 = vadd.f32 %v780, %v784
      %v788 = vxor.u32 %v786, 2147483648
      %v789 = vxor.u32 %v787, 2147483648
      %v790 = vmul.f32 %v788, 1.442695
      %v791 = vpow.pop %v790
      %v792 = vmul.f32 %v789, 1.442695
      %v793 = vpow.pop %v792
      %v794 = vadd.f32 %v791, 1.0
      %v795 = vadd.f32 %v793, 1.0
      %v796 = vrcp.pop %v794
      %v797 = vmul.f32 %v794, %v796
      %v798 = vsub.f32 1.0, %v797
      %v799 = vmul.f32 %v796, %v798
      %v800 = vadd.f32 %v796, %v799
      %vm801 = vweird.f32 %v794
      %vm802 = vweird.f32 %v796
      %vm803 = vmor %vm801, %vm802
      %v804 = vsel %vm803, %v796, %v800
      %v805 = vand.u32 2147483647, %v794
      %vm806 = vcmp.eq.f32.partialorder %v805, 8.507059e+37
      %v807 = vand.u32 %v794, 2147483648
      %v808 = vor.u32 1.1754944e-38, %v807
      %v809 = vsel %vm806, %v808, %v804
      %v810 = vmul.f32 1.0, %v809
      %v811 = vrcp.pop %v795
      %v812 = vmul.f32 %v795, %v811
      %v813 = vsub.f32 1.0, %v812
      %v814 = vmul.f32 %v811, %v813
      %v815 = vadd.f32 %v811, %v814
      %vm816 = vweird.f32 %v795
      %vm817 = vweird.f32 %v811
      %vm818 = vmor %vm816, %vm817
      %v819 = vsel %vm818, %v811, %v815
      %v820 = vand.u32 2147483647, %v795
      %vm821 = vcmp.eq.f32.partialorder %v820, 8.507059e+37
      %v822 = vand.u32 %v795, 2147483648
      %v823 = vor.u32 1.1754944e-38, %v822
      %v824 = vsel %vm821, %v823, %v819
      %v825 = vmul.f32 1.0, %v824
      %v826 = vld [vmem:[%s13] sm:$0x1]
      %v828 = vperm.slane %v826, 0
      %v830 = vmul.f32 %v810, %v828
      %v831 = vmul.f32 %v825, %v828
      %832 = vadd.xlane.f32.xlu0 %v830
      %v833 = vpop.xlane.xlu0 %832
      %834 = vadd.xlane.f32.xlu0 %v831
      %v835 = vpop.xlane.xlu0 %834
      %v836 = vld [vmem:[#allocation2] sm:$0x1]
      %v838 = vperm.slane %v836, 0
      %v840 = vadd.f32 %v833, %v838
      %v841 = vadd.f32 %v835, %v838
      %v842 = vxor.u32 %v840, 2147483648
      %v843 = vxor.u32 %v841, 2147483648
      %v844 = vmul.f32 %v842, 1.442695
      %v845 = vpow.pop %v844
      %v846 = vmul.f32 %v843, 1.442695
      %v847 = vpow.pop %v846
      %v848 = vadd.f32 %v845, 1.0
      %v849 = vadd.f32 %v847, 1.0
      %v850 = vrcp.pop %v848
      %v851 = vmul.f32 %v848, %v850
      %v852 = vsub.f32 1.0, %v851
      %v853 = vmul.f32 %v850, %v852
      %v854 = vadd.f32 %v850, %v853
      %vm855 = vweird.f32 %v848
      %vm856 = vweird.f32 %v850
      %vm857 = vmor %vm855, %vm856
      %v858 = vsel %vm857, %v850, %v854
      %v859 = vand.u32 2147483647, %v848
      %vm860 = vcmp.eq.f32.partialorder %v859, 8.507059e+37
      %v861 = vand.u32 %v848, 2147483648
      %v862 = vor.u32 1.1754944e-38, %v861
      %v863 = vsel %vm860, %v862, %v858
      %v864 = vmul.f32 1.0, %v863
      %v865 = vrcp.pop %v849
      %v866 = vmul.f32 %v849, %v865
      %v867 = vsub.f32 1.0, %v866
      %v868 = vmul.f32 %v865, %v867
      %v869 = vadd.f32 %v865, %v868
      %vm870 = vweird.f32 %v849
      %vm871 = vweird.f32 %v865
      %vm872 = vmor %vm870, %vm871
      %v873 = vsel %vm872, %v865, %v869
      %v874 = vand.u32 2147483647, %v849
      %vm875 = vcmp.eq.f32.partialorder %v874, 8.507059e+37
      %v876 = vand.u32 %v849, 2147483648
      %v877 = vor.u32 1.1754944e-38, %v876
      %v878 = vsel %vm875, %v877, %v873
      %v879 = vmul.f32 1.0, %v878
      %v880 = vsub.f32 %v864, %v879
      %v881 = vxor.u32 %v880, 2147483648
      %v882 = vmul.f32 %v881, 1.442695
      %v883 = vpow.pop %v882
      %v884 = vadd.f32 %v883, 1.0
      %v885 = vrcp.pop %v884
      %v886 = vmul.f32 %v884, %v885
      %v887 = vsub.f32 1.0, %v886
      %v888 = vmul.f32 %v885, %v887
      %v889 = vadd.f32 %v885, %v888
      %vm890 = vweird.f32 %v884
      %vm891 = vweird.f32 %v885
      %vm892 = vmor %vm890, %vm891
      %v893 = vsel %vm892, %v885, %v889
      %v894 = vand.u32 2147483647, %v884
      %vm895 = vcmp.eq.f32.partialorder %v894, 8.507059e+37
      %v896 = vand.u32 %v884, 2147483648
      %v897 = vor.u32 1.1754944e-38, %v896
      %v898 = vsel %vm895, %v897, %v893
      %v899 = vmul.f32 1.0, %v898
      %vm900 = vcmask 7168
      %901 = vst.msk [vmem:[%s525] sm:$0xff] %vm900, %v899
      %p902 = scmp.lt.s32.totalorder %s28, 1
      %s903 = scalar_select %p902, %s28, 1
      %s904 = smul.addr %s903, 8
      %s905 = scalar_lea.vmem %s15, %s904
      // Predicated region
      $region81: #{ncf_forward_pallas.1} parent=79 // pred_check
        %p906 = pneg %p376
      $region82: #{ncf_forward_pallas.1} parent=79 // pred_check_branch
        %908 = sbr.rel (%p906) target = $region84
      $region83: #{ncf_forward_pallas.1} parent=79 // pred_region
        _
      $region84: #{ncf_forward_pallas.1} parent=79 // pred_fallthru
        _
    $region80: #{ncf_forward_pallas.1} parent=5 // pred_fallthru
      _
    %p909 = scmp.le.s32.totalorder 2, %s23
    // Predicated region
    $region85: #{ncf_forward_pallas.1} parent=5 // pred_check
      %p910 = pneg %p909
    $region86: #{ncf_forward_pallas.1} parent=5 // pred_check_branch
      %912 = sbr.rel (%p910) target = $region88
    $region87: #{ncf_forward_pallas.1} parent=5 // pred_region
      %s913 = ssub.s32 %s23, 2
      // Predicated region
      $region89: #{ncf_forward_pallas.1} parent=87 // pred_check
        %p914 = pneg %p382
      $region90: #{ncf_forward_pallas.1} parent=87 // pred_check_branch
        %916 = sbr.rel (%p914) target = $region92
      $region91: #{ncf_forward_pallas.1} parent=87 // pred_region
        %p917 = scmp.lt.s32.totalorder %s29, 1
        %s918 = scalar_select %p917, %s29, 1
        %s919 = smul.addr %s918, 8
        %s920 = scalar_lea.vmem %s15, %s919
      $region92: #{ncf_forward_pallas.1} parent=87 // pred_fallthru
        _
    $region88: #{ncf_forward_pallas.1} parent=5 // pred_fallthru
      _
  $region6: #{ncf_forward_pallas.1} parent=0 // loop_footer
    %s27 = sadd.s32 1, %s23
  $region7: #{ncf_forward_pallas.1} parent=0 // loop_footer_branch
    %22 = sbr.rel target = $region3
  $region8: #{ncf_forward_pallas.1} parent=0 // loop_exit
    _

</llo_original>
